<compile_context>
chip_gen: v7x
topology: tpu7x:2x2x1
jax: 0.10.0
libtpu: 0.0.40
codegen_flags: <defaults>
</compile_context>

<pallas_src>
import functools

import numpy as np

import jax
import jax.numpy as jnp
from jax.experimental import pallas as pl
from jax.experimental.pallas import tpu as pltpu


# ---------------------------------------------------------------------------
# Shared math helpers (used both inside the kernel and by the JAX reference).
# ---------------------------------------------------------------------------
def _apply_nlactiv(y, nlactiv):
    if nlactiv == "leakyrelu":           # nn.LeakyReLU default slope 0.01
        return jnp.where(y > 0, y, 0.01 * y)
    if nlactiv == "relu":
        return jnp.maximum(y, 0.0)
    if nlactiv == "softplus":            # nn.Softplus(beta=100, threshold=20)
        z = y * 100.0
        # clamp the exp argument so the untaken branch never produces inf/NaN
        soft = jnp.log1p(jnp.exp(jnp.minimum(z, 20.0))) / 100.0
        return jnp.where(z > 20.0, y, soft)
    if nlactiv == "elu":                 # nn.ELU(0.1)
        return jnp.where(y > 0, y, 0.1 * (jnp.exp(jnp.minimum(y, 0.0)) - 1.0))
    if nlactiv == "sin":
        return jnp.sin(y)
    if nlactiv == "mish":                # x * tanh(softplus(x)), stable softplus
        sp = jnp.log1p(jnp.exp(-jnp.abs(y))) + jnp.maximum(y, 0.0)
        return y * jnp.tanh(sp)
    return y                             # unknown / None -> identity


def _apply_last_op(y, last_op, channel_axis):
    if last_op == "sigmoid":
        return jax.nn.sigmoid(y)
    if last_op == "tanh":
        return jnp.tanh(y)
    if last_op == "softmax":             # nn.Softmax(dim=1) -> channel axis
        return jax.nn.softmax(y, axis=channel_axis)
    return y


# ---------------------------------------------------------------------------
# Kernel
# ---------------------------------------------------------------------------
def _mlp_kernel(n_layers, res_layers, nlactiv, last_op, carry_dtype, precision,
                *refs):
    """refs = (x_ref, <per-layer params>, out_ref).

    Per-layer params (in order):
      non-residual layer:  w [C_out, C_in],                    b [C_out, 1] (f32)
      residual layer:      w_main [C_out, C_i], w_res [C_out, C0], b [C_out, 1]

    x_ref block: [1, C0, tn]   out_ref block: [1, C_out, tn]
    """
    x_ref = refs[0]
    out_ref = refs[-1]
    param_refs = refs[1:-1]

    x = x_ref[0]                          # [C0, tn], channels on sublane (bf16)
    y0 = x                                # residual input, held in HBM dtype
    y = x

    idx = 0
    for i in range(n_layers):
        if i in res_layers:
            w_main = param_refs[idx][...]
            w_res = param_refs[idx + 1][...]
            b = param_refs[idx + 2][...]               # f32 [C_out_i, 1]
            idx += 3
            acc = jnp.dot(w_main, y, preferred_element_type=jnp.float32,
                          precision=precision)
            acc = acc + jnp.dot(w_res, y0, preferred_element_type=jnp.float32,
                                precision=precision)
        else:
            w = param_refs[idx][...]
            b = param_refs[idx + 1][...]
            idx += 2
            acc = jnp.dot(w, y, preferred_element_type=jnp.float32,
                          precision=precision)
        yf = acc + b                                    # f32 [C_out_i, tn]
        if i != n_layers - 1:
            yf = _apply_nlactiv(yf, nlactiv)            # activation math in f32
            y = yf.astype(carry_dtype)                  # carry in bf16 (VMEM/vreg)
        else:
            y = yf
    y = _apply_last_op(y, last_op, channel_axis=0)
    out_ref[0] = y.astype(out_ref.dtype)                # lane-dense store


# ---------------------------------------------------------------------------
# Tiling / capability helpers
# ---------------------------------------------------------------------------
def _round_up(x, m):
    return (x + m - 1) // m * m


def _pick_tile(N, tn, B):
    """Lane-aligned point tile, never exceeding N (ragged tail handled by the
    Pallas clipped edge block).  Ensures >=2 grid steps when B==1 so both v7x
    TensorCores get work."""
    if N <= 128:
        return N                                   # full-dim block
    tn_eff = min(tn, (N // 128) * 128)
    if B * pl.cdiv(N, tn_eff) < 2:                 # B == 1 and a single tile
        tn_eff = min(tn_eff, max(128, _round_up((N + 1) // 2, 128)))
    return tn_eff


@functools.lru_cache(maxsize=None)
def _single_buffer_supported():
    """Capability probe for pl.BlockSpec(..., pipeline_mode=pl.Buffered(1))."""
    try:
        def _k(x_ref, o_ref):
            o_ref[...] = x_ref[...]
        fn = pl.pallas_call(
            _k,
            out_shape=jax.ShapeDtypeStruct((8, 128), jnp.float32),
            grid=(1,),
            in_specs=[pl.BlockSpec((8, 128), lambda i: (0, 0),
                                   pipeline_mode=pl.Buffered(1))],
            out_specs=pl.BlockSpec((8, 128), lambda i: (0, 0)),
        )
        res = jax.block_until_ready(fn(jnp.ones((8, 128), jnp.float32)))
        return bool(jnp.all(res == 1.0))
    except Exception:
        return False


# ---------------------------------------------------------------------------
# Wrapper
# ---------------------------------------------------------------------------
def mlp_forward(feature, weights, biases, *, res_layers=(), nlactiv="leakyrelu",
                last_op=None, tn=1024, compute_dtype=jnp.bfloat16,
                out_dtype=None, precision=None):
    """feature: [B, C0, N] (PyTorch NCW).  weights[i]: [C_out_i, C_in_i]
    (Conv1d weight with the trailing 1 squeezed), biases[i]: [C_out_i].
    Returns [B, C_out, N] in `out_dtype` (defaults to `compute_dtype`)."""
    B, C0, N = feature.shape
    n_layers = len(weights)
    c_out = weights[-1].shape[0]
    res_layers = tuple(sorted({int(r) for r in res_layers}))
    compute_dtype = np.dtype(compute_dtype)
    out_dtype = compute_dtype if out_dtype is None else np.dtype(out_dtype)
    assert tn >= 128 and tn % 128 == 0, "point tile must be a multiple of 128"

    tn_eff = _pick_tile(N, tn, B)
    grid = (B, pl.cdiv(N, tn_eff))

    # bf16 at the HBM boundary (near-2x fewer bytes in the mem-bound regime).
    x = feature.astype(compute_dtype)

    single_buf = _single_buffer_supported()

    def _const_spec(shape):
        # Grid-invariant params: single-buffer them (fetched once) when supported.
        if single_buf:
            return pl.BlockSpec(shape, lambda b, n: (0, 0),
                                pipeline_mode=pl.Buffered(1))
        return pl.BlockSpec(shape, lambda b, n: (0, 0))

    # x / out keep the default double-buffering; bump x to pl.Buffered(3) if a
    # trace shows exposed DMA after enlarging tn.
    in_specs = [pl.BlockSpec((1, C0, tn_eff), lambda b, n: (b, 0, n))]
    params = []
    for i, (w, bvec) in enumerate(zip(weights, biases)):
        cout_i, cin_full = w.shape
        w = w.astype(compute_dtype)
        b2d = bvec.reshape(cout_i, 1).astype(jnp.float32)   # bias stays f32
        if i in res_layers:
            cin_main = cin_full - C0          # split-weight residual form
            for p in (w[:, :cin_main], w[:, cin_main:]):
                in_specs.append(_const_spec(p.shape))
                params.append(p)
        else:
            in_specs.append(_const_spec(w.shape))
            params.append(w)
        in_specs.append(_const_spec(b2d.shape))
        params.append(b2d)

    # Explicit VMEM budget: 2x-buffered x/out blocks + f32 acc + carried y + y0
    # + weights (counted double-buffered for margin).  Floor 32 MiB, cap 64 MiB
    # (safe on v7x's 64 MiB physical VMEM; shrink tn for wide-channel configs).
    param_bytes = sum(int(p.size) * p.dtype.itemsize for p in params)
    widths = [C0] + [int(w.shape[0]) for w in weights]
    cbytes = compute_dtype.itemsize
    est = (2 * (C0 * cbytes + c_out * out_dtype.itemsize) * tn_eff
           + (2 * max(widths) * 4 + C0 * cbytes) * tn_eff
           + 2 * param_bytes)
    vmem_limit = int(min(64 * 2 ** 20, max(32 * 2 ** 20, 2 * est)))

    kernel = functools.partial(_mlp_kernel, n_layers, res_layers, nlactiv,
                               last_op, compute_dtype, precision)

    return pl.pallas_call(
        kernel,
        out_shape=jax.ShapeDtypeStruct((B, c_out, N), out_dtype),
        grid_spec=pltpu.PrefetchScalarGridSpec(
            num_scalar_prefetch=0,
            grid=grid,
            in_specs=in_specs,
            out_specs=pl.BlockSpec((1, c_out, tn_eff), lambda b, n: (b, 0, n)),
        ),
        compiler_params=pltpu.CompilerParams(
            dimension_semantics=("parallel", "parallel"),
            vmem_limit_bytes=vmem_limit),
    )(x, *params)


# ---------------------------------------------------------------------------
# Parameters & pure-JAX reference
# ---------------------------------------------------------------------------
def _init_params(key, filter_channels, res_layers):
    """Deterministic synthetic params; shapes match the PyTorch module
    (Conv1d weight [C_out, C_in, 1] with the trailing 1 squeezed)."""
    weights, biases = [], []
    c0 = filter_channels[0]
    for l in range(len(filter_channels) - 1):
        cin = filter_channels[l] + (c0 if l in res_layers else 0)
        cout = filter_channels[l + 1]
        key, kw, kb = jax.random.split(key, 3)
        scale = 1.0 / jnp.sqrt(jnp.float32(cin))
        weights.append(jax.random.uniform(kw, (cout, cin), jnp.float32,
                                          -scale, scale))
        biases.append(jax.random.uniform(kb, (cout,), jnp.float32,
                                         -scale, scale))
    return weights, biases


def _reference_forward(feature, weights, biases, res_layers, nlactiv, last_op):
    """Pure-JAX f32 reference mirroring the PyTorch forward (NCW layout)."""
    y = feature
    y0 = feature
    n_layers = len(weights)
    for i, (w, b) in enumerate(zip(weights, biases)):
        if i in res_layers:
            y = jnp.concatenate([y, y0], axis=1)
        # Conv1d k=1: out[b,o,n] = sum_i W[o,i] * y[b,i,n] + bias[o]
        y = jnp.einsum("oi,bin->bon", w, y) + b[None, :, None]
        if i != n_layers - 1:
            y = _apply_nlactiv(y, nlactiv)
    return _apply_last_op(y, last_op, channel_axis=1)


# ---------------------------------------------------------------------------
# Test harness
# ---------------------------------------------------------------------------
if __name__ == "__main__":
    # (filter_channels, res_layers, nlactiv, last_op, B, N, tn, compute_dtype, tol)
    configs = [
        # MLP([13, 32, 32, 4], res_layers=[2], last_op='sigmoid'); bf16 datapath
        ([13, 32, 32, 4], (2,), "leakyrelu", "sigmoid", 2, 256, 1024, jnp.bfloat16, 3e-2),
        # Ragged N (no pad/slice; clipped last block)
        ([13, 32, 32, 4], (2,), "leakyrelu", "sigmoid", 2, 200, 1024, jnp.bfloat16, 3e-2),
        # f32 path for a tight numerical check; no residual, tanh last op
        ([13, 32, 4],     (),   "leakyrelu", "tanh",    2, 128, 128,  jnp.float32,  1e-4),
        # softmax over channels + ragged tail, B=1
        ([8, 16, 8],      (),   "relu",      "softmax", 1, 384, 256,  jnp.bfloat16, 3e-2),
        # B=1, single-tile N -> exercises the v7x two-TC grid split, no last op
        ([13, 32, 4],     (),   "elu",       None,      1, 512, 1024, jnp.bfloat16, 3e-2),
    ]

    key = jax.random.PRNGKey(0)
    for (fc, res_layers, nlactiv, last_op, B, N, tn, cdt, tol) in configs:
        key, kx, kp = jax.random.split(key, 3)
        feature = jax.random.normal(kx, (B, fc[0], N), jnp.float32)
        weights, biases = _init_params(kp, fc, res_layers)

        out = mlp_forward(feature, weights, biases, res_layers=res_layers,
                          nlactiv=nlactiv, last_op=last_op, tn=tn,
                          compute_dtype=cdt)
        out = jax.block_until_ready(out).astype(jnp.float32)

        # Reference in f32 on the same dtype-cast inputs (isolates kernel error).
        f_ref = feature.astype(cdt).astype(jnp.float32)
        w_ref = [w.astype(cdt).astype(jnp.float32) for w in weights]
        ref = _reference_forward(f_ref, w_ref, biases, res_layers, nlactiv,
                                 last_op)

        assert out.shape == (B, fc[-1], N), out.shape
        err = float(jnp.max(jnp.abs(out - ref)))
        assert jnp.allclose(out, ref, atol=tol, rtol=tol), (fc, last_op, err)

    print("KERNEL_OK")
</pallas_src>

<mosaic_0001>
module attributes {stable_mosaic.version = 11 : i64} {
  func.func @_k(%arg0: i32, %arg1: memref<8x128xf32, #tpu.memory_space<vmem>>, %arg2: memref<8x128xf32, #tpu.memory_space<vmem>>) attributes {dimension_semantics = [#tpu.dimension_semantics<arbitrary>], iteration_bounds = array<i64: 1>, scalar_prefetch = 0 : i64, scratch_operands = 0 : i64, tpu.core_type = #tpu.core_type<tc>, window_params = [{pipeline_mode = #tpu.pipeline_mode<synchronous>, transform_indices = @transform_0, window_bounds = array<i64: 8, 128>}, {pipeline_mode = #tpu.pipeline_mode<synchronous>, transform_indices = @transform_1, window_bounds = array<i64: 8, 128>}]} {
    %c0 = arith.constant 0 : index
    %c0_0 = arith.constant 0 : index
    %0 = vector.load %arg1[%c0, %c0_0] : memref<8x128xf32, #tpu.memory_space<vmem>>, vector<8x128xf32>
    %c0_1 = arith.constant 0 : index
    %c0_2 = arith.constant 0 : index
    %1 = vector.load %arg2[%c0_1, %c0_2] : memref<8x128xf32, #tpu.memory_space<vmem>>, vector<8x128xf32>
    tpu.vector_store %arg2[%c0_1, %c0_2], %0 {strides = array<i32>} : memref<8x128xf32, #tpu.memory_space<vmem>>, vector<8x128xf32>,
    return
  }
  func.func @transform_0(%arg0: i32) -> (i32, i32) {
    %c0_i32 = arith.constant 0 : i32
    %c0_i32_0 = arith.constant 0 : i32
    %c0_i32_1 = arith.constant 0 : i32
    return %c0_i32, %c0_i32_0 : i32, i32
  }
  func.func @transform_1(%arg0: i32) -> (i32, i32) {
    %c0_i32 = arith.constant 0 : i32
    %c0_i32_0 = arith.constant 0 : i32
    %c0_i32_1 = arith.constant 0 : i32
    return %c0_i32, %c0_i32_0 : i32, i32
  }
}

module attributes {stable_mosaic.version = 11 : i64} {
  func.func @_mlp_kernel(%arg0: i32, %arg1: i32, %arg2: memref<1x13x256xbf16, #tpu.memory_space<vmem>>, %arg3: memref<32x13xbf16, #tpu.memory_space<vmem>>, %arg4: memref<32x1xf32, #tpu.memory_space<vmem>>, %arg5: memref<32x32xbf16, #tpu.memory_space<vmem>>, %arg6: memref<32x1xf32, #tpu.memory_space<vmem>>, %arg7: memref<4x32xbf16, #tpu.memory_space<vmem>>, %arg8: memref<4x13xbf16, #tpu.memory_space<vmem>>, %arg9: memref<4x1xf32, #tpu.memory_space<vmem>>, %arg10: memref<1x4x256xbf16, #tpu.memory_space<vmem>>) attributes {dimension_semantics = [#tpu.dimension_semantics<parallel>, #tpu.dimension_semantics<parallel>], iteration_bounds = array<i64: 2, 1>, scalar_prefetch = 0 : i64, scratch_operands = 0 : i64, tpu.core_type = #tpu.core_type<tc>, window_params = [{transform_indices = @transform_0, window_bounds = array<i64: 1, 13, 256>}, {pipeline_mode = #tpu.pipeline_mode<synchronous>, transform_indices = @transform_1, window_bounds = array<i64: 32, 13>}, {pipeline_mode = #tpu.pipeline_mode<synchronous>, transform_indices = @transform_2, window_bounds = array<i64: 32, 1>}, {pipeline_mode = #tpu.pipeline_mode<synchronous>, transform_indices = @transform_3, window_bounds = array<i64: 32, 32>}, {pipeline_mode = #tpu.pipeline_mode<synchronous>, transform_indices = @transform_4, window_bounds = array<i64: 32, 1>}, {pipeline_mode = #tpu.pipeline_mode<synchronous>, transform_indices = @transform_5, window_bounds = array<i64: 4, 32>}, {pipeline_mode = #tpu.pipeline_mode<synchronous>, transform_indices = @transform_6, window_bounds = array<i64: 4, 13>}, {pipeline_mode = #tpu.pipeline_mode<synchronous>, transform_indices = @transform_7, window_bounds = array<i64: 4, 1>}, {transform_indices = @transform_8, window_bounds = array<i64: 1, 4, 256>}]} {
    %c0 = arith.constant 0 : index
    %c0_0 = arith.constant 0 : index
    %c0_1 = arith.constant 0 : index
    %0 = vector.load %arg2[%c0, %c0_0, %c0_1] : memref<1x13x256xbf16, #tpu.memory_space<vmem>>, vector<1x13x256xbf16>
    %1 = vector.shape_cast %0 : vector<1x13x256xbf16> to vector<13x256xbf16>
    %c0_2 = arith.constant 0 : index
    %c0_3 = arith.constant 0 : index
    %2 = vector.load %arg3[%c0_2, %c0_3] : memref<32x13xbf16, #tpu.memory_space<vmem>>, vector<32x13xbf16>
    %c0_4 = arith.constant 0 : index
    %c0_5 = arith.constant 0 : index
    %3 = vector.load %arg4[%c0_4, %c0_5] : memref<32x1xf32, #tpu.memory_space<vmem>>, vector<32x1xf32>
    %cst = arith.constant dense<0.000000e+00> : vector<32x256xf32>
    %4 = tpu.matmul %2, %1, %cst {dimension_numbers = #tpu.dot_dimension_numbers<[1], [0], [0], [1], [0, 0, 1, 1], [], []>} : vector<32x13xbf16>, vector<13x256xbf16>, vector<32x256xf32> -> vector<32x256xf32>
    %5 = vector.broadcast %3 : vector<32x1xf32> to vector<32x256xf32>
    %6 = arith.addf %4, %5 : vector<32x256xf32>
    %cst_6 = arith.constant 0.000000e+00 : f32
    %7 = vector.broadcast %cst_6 : f32 to vector<32x256xf32>
    %8 = arith.cmpf ogt, %6, %7 : vector<32x256xf32>
    %cst_7 = arith.constant 0.00999999977 : f32
    %9 = vector.broadcast %cst_7 : f32 to vector<32x256xf32>
    %10 = arith.mulf %9, %6 : vector<32x256xf32>
    %11 = arith.select %8, %6, %10 : vector<32x256xi1>, vector<32x256xf32>
    %12 = arith.truncf %11 : vector<32x256xf32> to vector<32x256xbf16>
    %c0_8 = arith.constant 0 : index
    %c0_9 = arith.constant 0 : index
    %13 = vector.load %arg5[%c0_8, %c0_9] : memref<32x32xbf16, #tpu.memory_space<vmem>>, vector<32x32xbf16>
    %c0_10 = arith.constant 0 : index
    %c0_11 = arith.constant 0 : index
    %14 = vector.load %arg6[%c0_10, %c0_11] : memref<32x1xf32, #tpu.memory_space<vmem>>, vector<32x1xf32>
    %cst_12 = arith.constant dense<0.000000e+00> : vector<32x256xf32>
    %15 = tpu.matmul %13, %12, %cst_12 {dimension_numbers = #tpu.dot_dimension_numbers<[1], [0], [0], [1], [0, 0, 1, 1], [], []>} : vector<32x32xbf16>, vector<32x256xbf16>, vector<32x256xf32> -> vector<32x256xf32>
    %16 = vector.broadcast %14 : vector<32x1xf32> to vector<32x256xf32>
    %17 = arith.addf %15, %16 : vector<32x256xf32>
    %cst_13 = arith.constant 0.000000e+00 : f32
    %18 = vector.broadcast %cst_13 : f32 to vector<32x256xf32>
    %19 = arith.cmpf ogt, %17, %18 : vector<32x256xf32>
    %cst_14 = arith.constant 0.00999999977 : f32
    %20 = vector.broadcast %cst_14 : f32 to vector<32x256xf32>
    %21 = arith.mulf %20, %17 : vector<32x256xf32>
    %22 = arith.select %19, %17, %21 : vector<32x256xi1>, vector<32x256xf32>
    %23 = arith.truncf %22 : vector<32x256xf32> to vector<32x256xbf16>
    %c0_15 = arith.constant 0 : index
    %c0_16 = arith.constant 0 : index
    %24 = vector.load %arg7[%c0_15, %c0_16] : memref<4x32xbf16, #tpu.memory_space<vmem>>, vector<4x32xbf16>
    %c0_17 = arith.constant 0 : index
    %c0_18 = arith.constant 0 : index
    %25 = vector.load %arg8[%c0_17, %c0_18] : memref<4x13xbf16, #tpu.memory_space<vmem>>, vector<4x13xbf16>
    %c0_19 = arith.constant 0 : index
    %c0_20 = arith.constant 0 : index
    %26 = vector.load %arg9[%c0_19, %c0_20] : memref<4x1xf32, #tpu.memory_space<vmem>>, vector<4x1xf32>
    %cst_21 = arith.constant dense<0.000000e+00> : vector<4x256xf32>
    %27 = tpu.matmul %24, %23, %cst_21 {dimension_numbers = #tpu.dot_dimension_numbers<[1], [0], [0], [1], [0, 0, 1, 1], [], []>} : vector<4x32xbf16>, vector<32x256xbf16>, vector<4x256xf32> -> vector<4x256xf32>
    %cst_22 = arith.constant dense<0.000000e+00> : vector<4x256xf32>
    %28 = tpu.matmul %25, %1, %cst_22 {dimension_numbers = #tpu.dot_dimension_numbers<[1], [0], [0], [1], [0, 0, 1, 1], [], []>} : vector<4x13xbf16>, vector<13x256xbf16>, vector<4x256xf32> -> vector<4x256xf32>
    %29 = arith.addf %27, %28 : vector<4x256xf32>
    %30 = vector.broadcast %26 : vector<4x1xf32> to vector<4x256xf32>
    %31 = arith.addf %29, %30 : vector<4x256xf32>
    %32 = arith.negf %31 : vector<4x256xf32>
    %33 = math.exp %32 : vector<4x256xf32>
    %cst_23 = arith.constant 1.000000e+00 : f32
    %34 = vector.broadcast %cst_23 : f32 to vector<4x256xf32>
    %35 = arith.addf %34, %33 : vector<4x256xf32>
    %36 = arith.divf %34, %35 : vector<4x256xf32>
    %37 = arith.truncf %36 : vector<4x256xf32> to vector<4x256xbf16>
    %c0_24 = arith.constant 0 : index
    %c0_25 = arith.constant 0 : index
    %c0_26 = arith.constant 0 : index
    %38 = vector.load %arg10[%c0_24, %c0_25, %c0_26] : memref<1x4x256xbf16, #tpu.memory_space<vmem>>, vector<1x4x256xbf16>
    %39 = vector.shape_cast %38 : vector<1x4x256xbf16> to vector<4x256xbf16>
    %40 = vector.shape_cast %37 : vector<4x256xbf16> to vector<1x4x256xbf16>
    tpu.vector_store %arg10[%c0_24, %c0_25, %c0_26], %40 {strides = array<i32>} : memref<1x4x256xbf16, #tpu.memory_space<vmem>>, vector<1x4x256xbf16>,
    return
  }
  func.func @transform_0(%arg0: i32, %arg1: i32) -> (i32, i32, i32) {
    %c0_i32 = arith.constant 0 : i32
    %c0_i32_0 = arith.constant 0 : i32
    return %arg0, %c0_i32, %arg1 : i32, i32, i32
  }
  func.func @transform_1(%arg0: i32, %arg1: i32) -> (i32, i32) {
    %c0_i32 = arith.constant 0 : i32
    %c0_i32_0 = arith.constant 0 : i32
    %c0_i32_1 = arith.constant 0 : i32
    return %c0_i32, %c0_i32_0 : i32, i32
  }
  func.func @transform_2(%arg0: i32, %arg1: i32) -> (i32, i32) {
    %c0_i32 = arith.constant 0 : i32
    %c0_i32_0 = arith.constant 0 : i32
    %c0_i32_1 = arith.constant 0 : i32
    return %c0_i32, %c0_i32_0 : i32, i32
  }
  func.func @transform_3(%arg0: i32, %arg1: i32) -> (i32, i32) {
    %c0_i32 = arith.constant 0 : i32
    %c0_i32_0 = arith.constant 0 : i32
    %c0_i32_1 = arith.constant 0 : i32
    return %c0_i32, %c0_i32_0 : i32, i32
  }
  func.func @transform_4(%arg0: i32, %arg1: i32) -> (i32, i32) {
    %c0_i32 = arith.constant 0 : i32
    %c0_i32_0 = arith.constant 0 : i32
    %c0_i32_1 = arith.constant 0 : i32
    return %c0_i32, %c0_i32_0 : i32, i32
  }
  func.func @transform_5(%arg0: i32, %arg1: i32) -> (i32, i32) {
    %c0_i32 = arith.constant 0 : i32
    %c0_i32_0 = arith.constant 0 : i32
    %c0_i32_1 = arith.constant 0 : i32
    return %c0_i32, %c0_i32_0 : i32, i32
  }
  func.func @transform_6(%arg0: i32, %arg1: i32) -> (i32, i32) {
    %c0_i32 = arith.constant 0 : i32
    %c0_i32_0 = arith.constant 0 : i32
    %c0_i32_1 = arith.constant 0 : i32
    return %c0_i32, %c0_i32_0 : i32, i32
  }
  func.func @transform_7(%arg0: i32, %arg1: i32) -> (i32, i32) {
    %c0_i32 = arith.constant 0 : i32
    %c0_i32_0 = arith.constant 0 : i32
    %c0_i32_1 = arith.constant 0 : i32
    return %c0_i32, %c0_i32_0 : i32, i32
  }
  func.func @transform_8(%arg0: i32, %arg1: i32) -> (i32, i32, i32) {
    %c0_i32 = arith.constant 0 : i32
    %c0_i32_0 = arith.constant 0 : i32
    return %arg0, %c0_i32, %arg1 : i32, i32, i32
  }
}

</mosaic_0001>

<llo_original>
// kernel: tpu_custom_call.1
$region0: #{tpu_custom_call.1}
  #allocation0 [shape = 'u32[]', space=smem, size = 0x4, offset = 0x4, fixed_abs, tag = 'smem constant byte address 0x4 - core index']
  #allocation1 [shape = 'u32[144,128]{1,0:T(1,128)}', space=vmem, size = 0x12000, scoped, tag = 'internal scratch']
  %s0 = inlined_call_operand.hbm [shape: f32[8,128], index: 0, kind: input, shape index: {}]
  %s1 = inlined_call_operand.hbm [shape: f32[8,128], index: 1, kind: output, shape index: {}]
  %s2 = sld [smem:[#allocation0]]
  $region18: #{tpu_custom_call.1} parent=0
    _
  %s4 = ssub.s32 1, %s2
  %s5 = scalar_select 0, %s4, %s2
  $region1: #{tpu_custom_call.1} parent=0
    #allocation2 [shape = 'u8[4096]{0}', space=vmem, size = 0x1000, scoped, tag = 'input window, operand 0, single buffered']
    #allocation3 [shape = 's32[1]{0}', space=sflag, size = 0x4, scoped, tag = 'scoped memory for tpu_custom_call.1']
    #allocation4 [shape = 's32[1]{0}', space=sflag, size = 0x4, scoped, tag = 'scoped memory for tpu_custom_call.1']
    #allocation5 [shape = 'u8[4096]{0}', space=vmem, size = 0x1000, scoped, tag = 'output window, operand 0, single buffered']
    %6 = vsyncpa [#allocation3], 0
    %7 = vsyncpa [#allocation4], 0
    // Predicated region
    $region2: #{tpu_custom_call.1} parent=1 // pred_check
      _
    $region3: #{tpu_custom_call.1} parent=1 // pred_check_branch
      %9 = sbr.rel (0) target = $region5
    $region4: #{tpu_custom_call.1} parent=1 // pred_region
      %s11 = ssub.s32 128, 128
      %12 = vsyncadd [#allocation3], %s11
      %s14 = sshll.u32 [#allocation2], 4
      %s15 = int_to_ptr.vmem [resolvable:$true] %s14
      %17 = dma.hbm_to_vmem [thread:$0]  %s0, 128, %s15, [#allocation3]
    $region5: #{tpu_custom_call.1} parent=1 // pred_fallthru
      _
    // Predicated region
    $region6: #{tpu_custom_call.1} parent=1 // pred_check
      _
    $region7: #{tpu_custom_call.1} parent=1 // pred_check_branch
      %19 = sbr.rel (0) target = $region9
    $region8: #{tpu_custom_call.1} parent=1 // pred_region
      %20 = dma.done [#allocation3], 128
    $region9: #{tpu_custom_call.1} parent=1 // pred_fallthru
      _
    %v21 = vld [vmem:[#allocation2] sm:$0xff]
    %22 = vst [vmem:[#allocation5] sm:$0xff] %v21
    // Predicated region
    $region10: #{tpu_custom_call.1} parent=1 // pred_check
      _
    $region11: #{tpu_custom_call.1} parent=1 // pred_check_branch
      %24 = sbr.rel (0) target = $region13
    $region12: #{tpu_custom_call.1} parent=1 // pred_region
      %s26 = ssub.s32 128, 128
      %27 = vsyncadd [#allocation4], %s26
      %s29 = sshll.u32 [#allocation5], 4
      %s30 = int_to_ptr.vmem [resolvable:$true] %s29
      %32 = dma.vmem_to_hbm [thread:$0]  %s30, 128, %s1, [#allocation4]
    $region13: #{tpu_custom_call.1} parent=1 // pred_fallthru
      _
    // Predicated region
    $region14: #{tpu_custom_call.1} parent=1 // pred_check
      _
    $region15: #{tpu_custom_call.1} parent=1 // pred_check_branch
      %34 = sbr.rel (0) target = $region17
    $region16: #{tpu_custom_call.1} parent=1 // pred_region
      %35 = dma.done [#allocation4], 128
    $region17: #{tpu_custom_call.1} parent=1 // pred_fallthru
      _
    %36 = vsyncpa [#allocation3], 1
    %37 = vsyncpa [#allocation4], 1

// kernel: tpu_custom_call.1
$region0: #{tpu_custom_call.1}
  #allocation0 [shape = 'u32[]', space=smem, size = 0x4, offset = 0x4, fixed_abs, tag = 'smem constant byte address 0x4 - core index']
  #allocation1 [shape = 'u32[144,128]{1,0:T(1,128)}', space=vmem, size = 0x12000, scoped, tag = 'internal scratch']
  %s0 = inlined_call_operand.vmem [shape: bf16[2,13,256], index: 0, kind: input, shape index: {}]
  %s1 = inlined_call_operand.vmem [shape: bf16[32,13], index: 1, kind: input, shape index: {}]
  %s2 = inlined_call_operand.vmem [shape: f32[32,1], index: 2, kind: input, shape index: {}]
  %s3 = inlined_call_operand.vmem [shape: bf16[32,32], index: 3, kind: input, shape index: {}]
  %s4 = inlined_call_operand.vmem [shape: f32[32,1], index: 4, kind: input, shape index: {}]
  %s5 = inlined_call_operand.vmem [shape: bf16[4,32], index: 5, kind: input, shape index: {}]
  %s6 = inlined_call_operand.vmem [shape: bf16[4,13], index: 6, kind: input, shape index: {}]
  %s7 = inlined_call_operand.vmem [shape: f32[4,1], index: 7, kind: input, shape index: {}]
  %s8 = inlined_call_operand.hbm [shape: bf16[2,4,256], index: 8, kind: output, shape index: {}]
  %s9 = sld [smem:[#allocation0]]
  $region65: #{tpu_custom_call.1} parent=0
    _
  %s11 = ssub.s32 1, %s9
  %s12 = scalar_select 0, %s11, %s9
  $region1: #{tpu_custom_call.1} parent=0
    #allocation2 [shape = 'u8[4096]{0}', space=vmem, size = 0x1000, scoped, tag = 'output window, operand 0']
    #allocation3 [shape = 's32[2]{0}', space=sflag, size = 0x8, scoped, tag = 'scoped memory for tpu_custom_call.1']
    %13 = vsyncpa [#allocation3], 0
    %s14 = scalar_lea.sflag [#allocation3], 1
    %15 = vsyncpa %s14, 0
    loop: start=0, step=1, limit=4
    $region2: #{tpu_custom_call.1} parent=1 // loop_pre_header
      _
    $region3: #{tpu_custom_call.1} parent=1 // loop_header
      %s17 = sphi 0, %s21
      %p18 = scmp.ge.s32.totalorder %s17, 4
      %s24 = sphi 0, %s36
      %s25 = sphi 0, %s32
      %s26 = sphi 0, %s24
      %s27 = sphi 0, %s25
      %s28 = sphi 0, %s26
      %s29 = sphi 0, %s27
      %s41 = sphi 0, %s43
      %s44 = sphi 0, %s41
      %s45 = sphi 0, %s44
      %s61 = sphi 0, %s45
      %s65 = sphi 0, %s65
      %s67 = sphi 0, %s65
      %s68 = sphi 0, %s67
      %s82 = sphi 0, %s68
      %s86 = sphi 0, %s86
      %s88 = sphi 0, %s86
      %s89 = sphi 0, %s88
      %s103 = sphi 0, %s89
      %s107 = sphi 0, %s107
      %s109 = sphi 0, %s107
      %s110 = sphi 0, %s109
      %s124 = sphi 0, %s110
      %s128 = sphi 0, %s128
      %s130 = sphi 0, %s128
      %s131 = sphi 0, %s130
      %s145 = sphi 0, %s131
      %s149 = sphi 0, %s149
      %s151 = sphi 0, %s149
      %s152 = sphi 0, %s151
      %s166 = sphi 0, %s152
      %s170 = sphi 0, %s170
      %s172 = sphi 0, %s170
      %s173 = sphi 0, %s172
      %s187 = sphi 0, %s173
      %s191 = sphi 0, %s191
      %s193 = sphi 0, %s191
      %s194 = sphi 0, %s193
      %s208 = sphi 0, %s194
      %s216 = sphi 0, %s218
      %s219 = sphi 0, %s216
      %s220 = sphi 0, %s219
      %s236 = sphi 0, %s220
    $region4: #{tpu_custom_call.1} parent=1 // loop_header_branch
      %20 = sbr.rel (%p18) target = $region8
    $region5: #{tpu_custom_call.1} parent=1 // loop_body
      %s22 = ssub.s32 %s17, 1
      %s23 = ssub.s32 %s17, 2
      %s30 = sadd.s32 1, %s25
      %p31 = scmp.ge.s32.totalorder %s30, 1
      %s32 = scalar_select %p31, 0, %s30
      %s33 = sadd.s32 1, %s24
      %s34 = scalar_select %p31, %s33, %s24
      %p35 = scmp.ge.s32.totalorder %s34, 2
      %s36 = scalar_select %p35, 0, %s34
      %s37 = ssub.s32 %s24, %s36
      %s38 = ssub.s32 %s25, %s32
      %s39 = sor.u32 %s37, %s38
      %p40 = scmp.eq.s32.totalorder %s39, 0
      %s42 = sadd.s32 %s41, 1
      %s43 = scalar_select %p40, %s41, %s42
      %p46 = pneg %p40
      %p47 = scmp.eq.s32.totalorder %s17, 1
      %p48 = por %p46, %p47
      %p49 = scmp.ne.s32.totalorder %s41, %s44
      %p50 = scmp.eq.s32.totalorder %s17, 0
      %p51 = por %p49, %p50
      %p52 = scmp.ne.s32.totalorder %s41, %s44
      %p53 = scmp.eq.s32.totalorder %s22, 1
      %p54 = por %p52, %p53
      %p55 = scmp.ne.s32.totalorder %s44, %s45
      %p56 = scmp.eq.s32.totalorder %s22, 0
      %p57 = por %p55, %p56
      %p58 = scmp.ne.s32.totalorder %s44, %s45
      %p59 = scmp.eq.s32.totalorder %s23, 1
      %p60 = por %p58, %p59
      %p62 = scmp.ne.s32.totalorder %s45, %s61
      %p63 = scmp.eq.s32.totalorder %s23, 0
      %p64 = por %p62, %p63
      %s66 = sadd.s32 %s65, 1
      %p69 = scmp.eq.s32.totalorder %s17, 1
      %p70 = scmp.ne.s32.totalorder %s65, %s67
      %p71 = scmp.eq.s32.totalorder %s17, 0
      %p72 = por %p70, %p71
      %p73 = scmp.ne.s32.totalorder %s65, %s67
      %p74 = scmp.eq.s32.totalorder %s22, 1
      %p75 = por %p73, %p74
      %p76 = scmp.ne.s32.totalorder %s67, %s68
      %p77 = scmp.eq.s32.totalorder %s22, 0
      %p78 = por %p76, %p77
      %p79 = scmp.ne.s32.totalorder %s67, %s68
      %p80 = scmp.eq.s32.totalorder %s23, 1
      %p81 = por %p79, %p80
      %p83 = scmp.ne.s32.totalorder %s68, %s82
      %p84 = scmp.eq.s32.totalorder %s23, 0
      %p85 = por %p83, %p84
      %s87 = sadd.s32 %s86, 1
      %p90 = scmp.eq.s32.totalorder %s17, 1
      %p91 = scmp.ne.s32.totalorder %s86, %s88
      %p92 = scmp.eq.s32.totalorder %s17, 0
      %p93 = por %p91, %p92
      %p94 = scmp.ne.s32.totalorder %s86, %s88
      %p95 = scmp.eq.s32.totalorder %s22, 1
      %p96 = por %p94, %p95
      %p97 = scmp.ne.s32.totalorder %s88, %s89
      %p98 = scmp.eq.s32.totalorder %s22, 0
      %p99 = por %p97, %p98
      %p100 = scmp.ne.s32.totalorder %s88, %s89
      %p101 = scmp.eq.s32.totalorder %s23, 1
      %p102 = por %p100, %p101
      %p104 = scmp.ne.s32.totalorder %s89, %s103
      %p105 = scmp.eq.s32.totalorder %s23, 0
      %p106 = por %p104, %p105
      %s108 = sadd.s32 %s107, 1
      %p111 = scmp.eq.s32.totalorder %s17, 1
      %p112 = scmp.ne.s32.totalorder %s107, %s109
      %p113 = scmp.eq.s32.totalorder %s17, 0
      %p114 = por %p112, %p113
      %p115 = scmp.ne.s32.totalorder %s107, %s109
      %p116 = scmp.eq.s32.totalorder %s22, 1
      %p117 = por %p115, %p116
      %p118 = scmp.ne.s32.totalorder %s109, %s110
      %p119 = scmp.eq.s32.totalorder %s22, 0
      %p120 = por %p118, %p119
      %p121 = scmp.ne.s32.totalorder %s109, %s110
      %p122 = scmp.eq.s32.totalorder %s23, 1
      %p123 = por %p121, %p122
      %p125 = scmp.ne.s32.totalorder %s110, %s124
      %p126 = scmp.eq.s32.totalorder %s23, 0
      %p127 = por %p125, %p126
      %s129 = sadd.s32 %s128, 1
      %p132 = scmp.eq.s32.totalorder %s17, 1
      %p133 = scmp.ne.s32.totalorder %s128, %s130
      %p134 = scmp.eq.s32.totalorder %s17, 0
      %p135 = por %p133, %p134
      %p136 = scmp.ne.s32.totalorder %s128, %s130
      %p137 = scmp.eq.s32.totalorder %s22, 1
      %p138 = por %p136, %p137
      %p139 = scmp.ne.s32.totalorder %s130, %s131
      %p140 = scmp.eq.s32.totalorder %s22, 0
      %p141 = por %p139, %p140
      %p142 = scmp.ne.s32.totalorder %s130, %s131
      %p143 = scmp.eq.s32.totalorder %s23, 1
      %p144 = por %p142, %p143
      %p146 = scmp.ne.s32.totalorder %s131, %s145
      %p147 = scmp.eq.s32.totalorder %s23, 0
      %p148 = por %p146, %p147
      %s150 = sadd.s32 %s149, 1
      %p153 = scmp.eq.s32.totalorder %s17, 1
      %p154 = scmp.ne.s32.totalorder %s149, %s151
      %p155 = scmp.eq.s32.totalorder %s17, 0
      %p156 = por %p154, %p155
      %p157 = scmp.ne.s32.totalorder %s149, %s151
      %p158 = scmp.eq.s32.totalorder %s22, 1
      %p159 = por %p157, %p158
      %p160 = scmp.ne.s32.totalorder %s151, %s152
      %p161 = scmp.eq.s32.totalorder %s22, 0
      %p162 = por %p160, %p161
      %p163 = scmp.ne.s32.totalorder %s151, %s152
      %p164 = scmp.eq.s32.totalorder %s23, 1
      %p165 = por %p163, %p164
      %p167 = scmp.ne.s32.totalorder %s152, %s166
      %p168 = scmp.eq.s32.totalorder %s23, 0
      %p169 = por %p167, %p168
      %s171 = sadd.s32 %s170, 1
      %p174 = scmp.eq.s32.totalorder %s17, 1
      %p175 = scmp.ne.s32.totalorder %s170, %s172
      %p176 = scmp.eq.s32.totalorder %s17, 0
      %p177 = por %p175, %p176
      %p178 = scmp.ne.s32.totalorder %s170, %s172
      %p179 = scmp.eq.s32.totalorder %s22, 1
      %p180 = por %p178, %p179
      %p181 = scmp.ne.s32.totalorder %s172, %s173
      %p182 = scmp.eq.s32.totalorder %s22, 0
      %p183 = por %p181, %p182
      %p184 = scmp.ne.s32.totalorder %s172, %s173
      %p185 = scmp.eq.s32.totalorder %s23, 1
      %p186 = por %p184, %p185
      %p188 = scmp.ne.s32.totalorder %s173, %s187
      %p189 = scmp.eq.s32.totalorder %s23, 0
      %p190 = por %p188, %p189
      %s192 = sadd.s32 %s191, 1
      %p195 = scmp.eq.s32.totalorder %s17, 1
      %p196 = scmp.ne.s32.totalorder %s191, %s193
      %p197 = scmp.eq.s32.totalorder %s17, 0
      %p198 = por %p196, %p197
      %p199 = scmp.ne.s32.totalorder %s191, %s193
      %p200 = scmp.eq.s32.totalorder %s22, 1
      %p201 = por %p199, %p200
      %p202 = scmp.ne.s32.totalorder %s193, %s194
      %p203 = scmp.eq.s32.totalorder %s22, 0
      %p204 = por %p202, %p203
      %p205 = scmp.ne.s32.totalorder %s193, %s194
      %p206 = scmp.eq.s32.totalorder %s23, 1
      %p207 = por %p205, %p206
      %p209 = scmp.ne.s32.totalorder %s194, %s208
      %p210 = scmp.eq.s32.totalorder %s23, 0
      %p211 = por %p209, %p210
      %s212 = ssub.s32 %s24, %s36
      %s213 = ssub.s32 %s25, %s32
      %s214 = sor.u32 %s212, %s213
      %p215 = scmp.eq.s32.totalorder %s214, 0
      %s217 = sadd.s32 %s216, 1
      %s218 = scalar_select %p215, %s216, %s217
      %p221 = pneg %p215
      %p222 = scmp.eq.s32.totalorder %s17, 1
      %p223 = por %p221, %p222
      %p224 = scmp.ne.s32.totalorder %s216, %s219
      %p225 = scmp.eq.s32.totalorder %s17, 0
      %p226 = por %p224, %p225
      %p227 = scmp.ne.s32.totalorder %s216, %s219
      %p228 = scmp.eq.s32.totalorder %s22, 1
      %p229 = por %p227, %p228
      %p230 = scmp.ne.s32.totalorder %s219, %s220
      %p231 = scmp.eq.s32.totalorder %s22, 0
      %p232 = por %p230, %p231
      %p233 = scmp.ne.s32.totalorder %s219, %s220
      %p234 = scmp.eq.s32.totalorder %s23, 1
      %p235 = por %p233, %p234
      %p237 = scmp.ne.s32.totalorder %s220, %s236
      %p238 = scmp.eq.s32.totalorder %s23, 0
      %p239 = por %p237, %p238
      %p240 = scmp.le.s32.totalorder 1, %s17
      %p241 = scmp.lt.s32.totalorder %s17, 3
      %p242 = pnand %p240, %p241
      %p243 = pneg %p242
      // Predicated region
      $region9: #{tpu_custom_call.1} parent=5 // pred_check
        _
      $region10: #{tpu_custom_call.1} parent=5 // pred_check_branch
        %245 = sbr.rel (%p242) target = $region12
      $region11: #{tpu_custom_call.1} parent=5 // pred_region
        %s246 = ssub.s32 %s17, 1
        // Predicated region
        $region13: #{tpu_custom_call.1} parent=11 // pred_check
          %p247 = pneg %p78
        $region14: #{tpu_custom_call.1} parent=11 // pred_check_branch
          %249 = sbr.rel (%p247) target = $region16
        $region15: #{tpu_custom_call.1} parent=11 // pred_region
          _
        $region16: #{tpu_custom_call.1} parent=11 // pred_fallthru
          _
        // Predicated region
        $region17: #{tpu_custom_call.1} parent=11 // pred_check
          %p250 = pneg %p99
        $region18: #{tpu_custom_call.1} parent=11 // pred_check_branch
          %252 = sbr.rel (%p250) target = $region20
        $region19: #{tpu_custom_call.1} parent=11 // pred_region
          _
        $region20: #{tpu_custom_call.1} parent=11 // pred_fallthru
          _
        // Predicated region
        $region21: #{tpu_custom_call.1} parent=11 // pred_check
          %p253 = pneg %p120
        $region22: #{tpu_custom_call.1} parent=11 // pred_check_branch
          %255 = sbr.rel (%p253) target = $region24
        $region23: #{tpu_custom_call.1} parent=11 // pred_region
          _
        $region24: #{tpu_custom_call.1} parent=11 // pred_fallthru
          _
        // Predicated region
        $region25: #{tpu_custom_call.1} parent=11 // pred_check
          %p256 = pneg %p141
        $region26: #{tpu_custom_call.1} parent=11 // pred_check_branch
          %258 = sbr.rel (%p256) target = $region28
        $region27: #{tpu_custom_call.1} parent=11 // pred_region
          _
        $region28: #{tpu_custom_call.1} parent=11 // pred_fallthru
          _
        // Predicated region
        $region29: #{tpu_custom_call.1} parent=11 // pred_check
          %p259 = pneg %p162
        $region30: #{tpu_custom_call.1} parent=11 // pred_check_branch
          %261 = sbr.rel (%p259) target = $region32
        $region31: #{tpu_custom_call.1} parent=11 // pred_region
          _
        $region32: #{tpu_custom_call.1} parent=11 // pred_fallthru
          _
        // Predicated region
        $region33: #{tpu_custom_call.1} parent=11 // pred_check
          %p262 = pneg %p183
        $region34: #{tpu_custom_call.1} parent=11 // pred_check_branch
          %264 = sbr.rel (%p262) target = $region36
        $region35: #{tpu_custom_call.1} parent=11 // pred_region
          _
        $region36: #{tpu_custom_call.1} parent=11 // pred_fallthru
          _
        // Predicated region
        $region37: #{tpu_custom_call.1} parent=11 // pred_check
          %p265 = pneg %p204
        $region38: #{tpu_custom_call.1} parent=11 // pred_check_branch
          %267 = sbr.rel (%p265) target = $region40
        $region39: #{tpu_custom_call.1} parent=11 // pred_region
          _
        $region40: #{tpu_custom_call.1} parent=11 // pred_fallthru
          _
      $region12: #{tpu_custom_call.1} parent=5 // pred_fallthru
        _
      %p268 = scmp.lt.s32.totalorder %s17, 2
      // Predicated region
      $region41: #{tpu_custom_call.1} parent=5 // pred_check
        %p269 = pneg %p268
      $region42: #{tpu_custom_call.1} parent=5 // pred_check_branch
        %271 = sbr.rel (%p269) target = $region44
      $region43: #{tpu_custom_call.1} parent=5 // pred_region
        // Predicated region
        $region45: #{tpu_custom_call.1} parent=43 // pred_check
          %p272 = pneg %p51
        $region46: #{tpu_custom_call.1} parent=43 // pred_check_branch
          %274 = sbr.rel (%p272) target = $region48
        $region47: #{tpu_custom_call.1} parent=43 // pred_region
          %s275 = smul.u32 2, %s25
          %p276 = scmp.lt.s32.totalorder %s24, 1
          %s277 = scalar_select %p276, %s24, 1
          %p278 = scmp.lt.s32.totalorder %s275, 1
          %s279 = scalar_select %p278, %s275, 1
          %s280 = smul.addr %s277, 4
          %s281 = sadd.s32 %s279, %s280
          %s282 = smul.addr %s281, 4
          %s283 = scalar_lea.vmem %s0, %s282
          %s284 = smul.u32 2, %s25
        $region48: #{tpu_custom_call.1} parent=43 // pred_fallthru
          _
      $region44: #{tpu_custom_call.1} parent=5 // pred_fallthru
        _
      %p285 = scmp.le.s32.totalorder 1, %s17
      %p286 = scmp.lt.s32.totalorder %s17, 3
      %p287 = pnand %p285, %p286
      %p288 = pneg %p287
      // Predicated region
      $region49: #{tpu_custom_call.1} parent=5 // pred_check
        _
      $region50: #{tpu_custom_call.1} parent=5 // pred_check_branch
        %290 = sbr.rel (%p287) target = $region52
      $region51: #{tpu_custom_call.1} parent=5 // pred_region
        %s291 = ssub.s32 %s17, 1
        %s292 = smul.u32 2, %s27
        %p293 = scmp.lt.s32.totalorder %s26, 1
        %s294 = scalar_select %p293, %s26, 1
        %p295 = scmp.lt.s32.totalorder %s292, 1
        %s296 = scalar_select %p295, %s292, 1
        %s297 = smul.addr %s294, 4
        %s298 = sadd.s32 %s296, %s297
        %s299 = smul.addr %s298, 4
        %s300 = scalar_lea.vmem %s0, %s299
        %p301 = pneg %p57
        %p302 = pneg %p54
        %p303 = pneg %p78
        %p304 = pneg %p75
        %p305 = pneg %p99
        %p306 = pneg %p96
        %p307 = pneg %p120
        %p308 = pneg %p117
        %p309 = pneg %p141
        %p310 = pneg %p138
        %p311 = pneg %p162
        %p312 = pneg %p159
        %p313 = pneg %p183
        %p314 = pneg %p180
        %p315 = pneg %p204
        %p316 = pneg %p201
        %p317 = pneg %p232
        %p318 = pneg %p229
        %s319 = sand.u32 %s219, 1
        %s320 = scalar_lea.sflag [#allocation3], %s319
        %s321 = sand.u32 %s219, 1
        %s322 = smul.addr %s321, 4
        %s323 = scalar_lea.vmem [#allocation2], %s322
        %s324 = smul.u32 2, %s27
        %p325 = scmp.lt.s32.totalorder %s26, 1
        %s326 = scalar_select %p325, %s26, 1
        %p327 = scmp.lt.s32.totalorder %s324, 1
        %s328 = scalar_select %p327, %s324, 1
        %s329 = smul.addr %s326, 4
        %s330 = sadd.s32 %s328, %s329
        %s331 = smul.addr %s330, 4
        %s332 = scalar_lea.vmem %s0, %s331
        %s333 = smul.u32 2, %s27
        %s334 = smul.u32 2, %s27
        %v336 = vld [vmem:[%s332] sm:$0xff]
        %v337 = vld [vmem:[%s332 + $0x8] sm:$0x77]
        %v338 = vld [vmem:[%s1] sm:$0xf]
        %v339 = vld [vmem:[%s1 + $0x4] sm:$0xf]
        %v340 = vld [vmem:[%s1 + $0x8] sm:$0xf]
        %v341 = vld [vmem:[%s1 + $0xc] sm:$0xf]
        %v342 = vld [vmem:[%s2] sm:$0xff]
        %v343 = vld [vmem:[%s2 + $0x8] sm:$0xff]
        %v344 = vld [vmem:[%s2 + $0x10] sm:$0xff]
        %v345 = vld [vmem:[%s2 + $0x18] sm:$0xff]
        %347 = vset.pattern.permute.xlu0 0
        %348 = vperm.xlu0 %347, %v342
        %v349 = vpop.permute.xlu0 %348
        %352 = vset.pattern.permute.xlu0 0
        %353 = vperm.xlu0 %352, %v343
        %v354 = vpop.permute.xlu0 %353
        %357 = vset.pattern.permute.xlu0 0
        %358 = vperm.xlu0 %357, %v344
        %v359 = vpop.permute.xlu0 %358
        %362 = vset.pattern.permute.xlu0 0
        %363 = vperm.xlu0 %362, %v345
        %v364 = vpop.permute.xlu0 %363
        %v370 = vunpack.c.l.b16 %v338
        %v371 = vunpack.c.l.b16 %v339
        %v372 = vunpack.c.l.b16 %v340
        %v373 = vunpack.c.l.b16 %v341
        %v374 = vpack.c.b16 %v371, %v370
        %v375 = vpack.c.b16 %v373, %v372
        %v378 = vunpack.c.l.b16 %v336
        %v379 = vunpack.c.h.b16 %v336
        %v380 = vunpack.c.l.b16 %v337
        %v381 = vunpack.c.h.b16 %v337
        %v382 = vpack.c.b16 %v380, %v378
        %v383 = vpack.c.b16 %v381, %v379
        %vm384 = vcmask 105472
        %v386 = vsel %vm384, %v374, 0
        %v389 = vsel %vm384, %v375, 0
        %vm391 = vcmask 1045504
        %vm392 = vcmask 1046528
        %v393 = vsel %vm391, 4294967295, 65535
        %v394 = vsel %vm392, %v393, 0
        %v396 = vand.u32 %v382, %v394
        %v399 = vand.u32 %v383, %v394
        %401 = vmatprep.subr.bf16.mxu0 %v399
        %402 = vmatpush1.bf16.msra.mxu0 %v396
        %403 = vmatprep.subr.bf16.mxu0 0
        %404 = vmatpush1.bf16.msra.mxu0 0
        %405 = vmatprep.subr.bf16.mxu0 0
        %406 = vmatpush1.bf16.msra.mxu0 0
        %407 = vmatprep.subr.bf16.mxu0 0
        %408 = vmatpush1.bf16.msra.mxu0 0
        %409 = vmatprep.subr.bf16.mxu0 0
        %410 = vmatpush1.bf16.msra.mxu0 0
        %411 = vmatprep.subr.bf16.mxu0 0
        %412 = vmatpush1.bf16.msra.mxu0 0
        %413 = vmatprep.subr.bf16.mxu0 0
        %414 = vmatpush1.bf16.msra.mxu0 0
        %415 = vmatprep.subr.bf16.mxu0 0
        %416 = vmatpush1.bf16.msra.mxu0 0
        %417 = vmatprep.subr.bf16.mxu0 0
        %418 = vmatpush1.bf16.msra.mxu0 0
        %419 = vmatprep.subr.bf16.mxu0 0
        %420 = vmatpush1.bf16.msra.mxu0 0
        %421 = vmatprep.subr.bf16.mxu0 0
        %422 = vmatpush1.bf16.msra.mxu0 0
        %423 = vmatprep.subr.bf16.mxu0 0
        %424 = vmatpush1.bf16.msra.mxu0 0
        %425 = vmatprep.subr.bf16.mxu0 0
        %426 = vmatpush1.bf16.msra.mxu0 0
        %427 = vmatprep.subr.bf16.mxu0 0
        %428 = vmatpush1.bf16.msra.mxu0 0
        %429 = vmatprep.subr.bf16.mxu0 0
        %430 = vmatpush1.bf16.msra.mxu0 0
        %431 = vmatprep.subr.bf16.mxu0 0
        %432 = vmatpush1.bf16.msra.mxu0 0
        %433 = vmatprep.mubr.bf16.mxu0 0
        %434 = vmatmul.mubr.bf16.gmra.mrb[0].mxu0 %v386
        %v435 = vpop.f32.mrb[0].mxu0
        %v436 = vadd.f32 %v349, %v435
        %v437 = vpop.f32.mrb[0].mxu0
        %v438 = vadd.f32 %v349, %v437
        %v439 = vpop.f32.mrb[0].mxu0
        %v440 = vadd.f32 %v354, %v439
        %v441 = vpop.f32.mrb[0].mxu0
        %v442 = vadd.f32 %v354, %v441
        %443 = vmatprep.mubr.bf16.mxu0 0
        %444 = vmatmul.mubr.bf16.gmra.mrb[0].mxu0 %v389
        %v445 = vpop.f32.mrb[0].mxu0
        %v446 = vadd.f32 %v359, %v445
        %v447 = vpop.f32.mrb[0].mxu0
        %v448 = vadd.f32 %v359, %v447
        %v449 = vpop.f32.mrb[0].mxu0
        %v450 = vadd.f32 %v364, %v449
        %v451 = vpop.f32.mrb[0].mxu0
        %v452 = vadd.f32 %v364, %v451
        %453 = vdwg.mxu0
        %vm454 = vcmp.gt.f32.partialorder %v436, 0.0
        %vm455 = vcmp.gt.f32.partialorder %v438, 0.0
        %vm456 = vcmp.gt.f32.partialorder %v440, 0.0
        %vm457 = vcmp.gt.f32.partialorder %v442, 0.0
        %vm458 = vcmp.gt.f32.partialorder %v446, 0.0
        %vm459 = vcmp.gt.f32.partialorder %v448, 0.0
        %vm460 = vcmp.gt.f32.partialorder %v450, 0.0
        %vm461 = vcmp.gt.f32.partialorder %v452, 0.0
        %v462 = vmul.f32 %v436, 0.01
        %v463 = vmul.f32 %v438, 0.01
        %v464 = vmul.f32 %v440, 0.01
        %v465 = vmul.f32 %v442, 0.01
        %v466 = vmul.f32 %v446, 0.01
        %v467 = vmul.f32 %v448, 0.01
        %v468 = vmul.f32 %v450, 0.01
        %v469 = vmul.f32 %v452, 0.01
        %v470 = vsel %vm454, %v436, %v462
        %v471 = vsel %vm455, %v438, %v463
        %v472 = vsel %vm456, %v440, %v464
        %v473 = vsel %vm457, %v442, %v465
        %v474 = vsel %vm458, %v446, %v466
        %v475 = vsel %vm459, %v448, %v467
        %v476 = vsel %vm460, %v450, %v468
        %v477 = vsel %vm461, %v452, %v469
        %v478 = vpack.c.bf16 %v472, %v470
        %v479 = vpack.c.bf16 %v473, %v471
        %v480 = vpack.c.bf16 %v476, %v474
        %v481 = vpack.c.bf16 %v477, %v475
        %v482 = vld [vmem:[%s3] sm:$0xf]
        %v483 = vld [vmem:[%s3 + $0x4] sm:$0xf]
        %v484 = vld [vmem:[%s3 + $0x8] sm:$0xf]
        %v485 = vld [vmem:[%s3 + $0xc] sm:$0xf]
        %v486 = vld [vmem:[%s4] sm:$0xff]
        %v487 = vld [vmem:[%s4 + $0x8] sm:$0xff]
        %v488 = vld [vmem:[%s4 + $0x10] sm:$0xff]
        %v489 = vld [vmem:[%s4 + $0x18] sm:$0xff]
        %491 = vset.pattern.permute.xlu0 0
        %492 = vperm.xlu0 %491, %v486
        %v493 = vpop.permute.xlu0 %492
        %496 = vset.pattern.permute.xlu0 0
        %497 = vperm.xlu0 %496, %v487
        %v498 = vpop.permute.xlu0 %497
        %501 = vset.pattern.permute.xlu0 0
        %502 = vperm.xlu0 %501, %v488
        %v503 = vpop.permute.xlu0 %502
        %506 = vset.pattern.permute.xlu0 0
        %507 = vperm.xlu0 %506, %v489
        %v508 = vpop.permute.xlu0 %507
        %v514 = vunpack.c.l.b16 %v482
        %v515 = vunpack.c.l.b16 %v483
        %v516 = vunpack.c.l.b16 %v484
        %v517 = vunpack.c.l.b16 %v485
        %v518 = vpack.c.b16 %v515, %v514
        %v519 = vpack.c.b16 %v517, %v516
        %vm520 = vcmask 261120
        %v522 = vsel %vm520, %v518, 0
        %v525 = vsel %vm520, %v519, 0
        %527 = vmatprep.subr.bf16.mxu0 %v479
        %528 = vmatpush1.bf16.msra.mxu0 %v478
        %529 = vmatprep.subr.bf16.mxu0 %v481
        %530 = vmatpush1.bf16.msra.mxu0 %v480
        %531 = vmatprep.subr.bf16.mxu0 0
        %532 = vmatpush1.bf16.msra.mxu0 0
        %533 = vmatprep.subr.bf16.mxu0 0
        %534 = vmatpush1.bf16.msra.mxu0 0
        %535 = vmatprep.subr.bf16.mxu0 0
        %536 = vmatpush1.bf16.msra.mxu0 0
        %537 = vmatprep.subr.bf16.mxu0 0
        %538 = vmatpush1.bf16.msra.mxu0 0
        %539 = vmatprep.subr.bf16.mxu0 0
        %540 = vmatpush1.bf16.msra.mxu0 0
        %541 = vmatprep.subr.bf16.mxu0 0
        %542 = vmatpush1.bf16.msra.mxu0 0
        %543 = vmatprep.subr.bf16.mxu0 0
        %544 = vmatpush1.bf16.msra.mxu0 0
        %545 = vmatprep.subr.bf16.mxu0 0
        %546 = vmatpush1.bf16.msra.mxu0 0
        %547 = vmatprep.subr.bf16.mxu0 0
        %548 = vmatpush1.bf16.msra.mxu0 0
        %549 = vmatprep.subr.bf16.mxu0 0
        %550 = vmatpush1.bf16.msra.mxu0 0
        %551 = vmatprep.subr.bf16.mxu0 0
        %552 = vmatpush1.bf16.msra.mxu0 0
        %553 = vmatprep.subr.bf16.mxu0 0
        %554 = vmatpush1.bf16.msra.mxu0 0
        %555 = vmatprep.subr.bf16.mxu0 0
        %556 = vmatpush1.bf16.msra.mxu0 0
        %557 = vmatprep.subr.bf16.mxu0 0
        %558 = vmatpush1.bf16.msra.mxu0 0
        %559 = vmatprep.mubr.bf16.mxu0 0
        %560 = vmatmul.mubr.bf16.gmra.mrb[0].mxu0 %v522
        %v561 = vpop.f32.mrb[0].mxu0
        %v562 = vadd.f32 %v493, %v561
        %v563 = vpop.f32.mrb[0].mxu0
        %v564 = vadd.f32 %v493, %v563
        %v565 = vpop.f32.mrb[0].mxu0
        %v566 = vadd.f32 %v498, %v565
        %v567 = vpop.f32.mrb[0].mxu0
        %v568 = vadd.f32 %v498, %v567
        %569 = vmatprep.mubr.bf16.mxu0 0
        %570 = vmatmul.mubr.bf16.gmra.mrb[0].mxu0 %v525
        %v571 = vpop.f32.mrb[0].mxu0
        %v572 = vadd.f32 %v503, %v571
        %v573 = vpop.f32.mrb[0].mxu0
        %v574 = vadd.f32 %v503, %v573
        %v575 = vpop.f32.mrb[0].mxu0
        %v576 = vadd.f32 %v508, %v575
        %v577 = vpop.f32.mrb[0].mxu0
        %v578 = vadd.f32 %v508, %v577
        %579 = vdwg.mxu0
        %vm580 = vcmp.gt.f32.partialorder %v562, 0.0
        %vm581 = vcmp.gt.f32.partialorder %v564, 0.0
        %vm582 = vcmp.gt.f32.partialorder %v566, 0.0
        %vm583 = vcmp.gt.f32.partialorder %v568, 0.0
        %vm584 = vcmp.gt.f32.partialorder %v572, 0.0
        %vm585 = vcmp.gt.f32.partialorder %v574, 0.0
        %vm586 = vcmp.gt.f32.partialorder %v576, 0.0
        %vm587 = vcmp.gt.f32.partialorder %v578, 0.0
        %v588 = vmul.f32 %v562, 0.01
        %v589 = vmul.f32 %v564, 0.01
        %v590 = vmul.f32 %v566, 0.01
        %v591 = vmul.f32 %v568, 0.01
        %v592 = vmul.f32 %v572, 0.01
        %v593 = vmul.f32 %v574, 0.01
        %v594 = vmul.f32 %v576, 0.01
        %v595 = vmul.f32 %v578, 0.01
        %v596 = vsel %vm580, %v562, %v588
        %v597 = vsel %vm581, %v564, %v589
        %v598 = vsel %vm582, %v566, %v590
        %v599 = vsel %vm583, %v568, %v591
        %v600 = vsel %vm584, %v572, %v592
        %v601 = vsel %vm585, %v574, %v593
        %v602 = vsel %vm586, %v576, %v594
        %v603 = vsel %vm587, %v578, %v595
        %v604 = vpack.c.bf16 %v598, %v596
        %v605 = vpack.c.bf16 %v599, %v597
        %v606 = vpack.c.bf16 %v602, %v600
        %v607 = vpack.c.bf16 %v603, %v601
        %v608 = vld [vmem:[%s5] sm:$0x3]
        %v609 = vld [vmem:[%s6] sm:$0x3]
        %v610 = vld [vmem:[%s7] sm:$0xf]
        %v612 = vsel %vm384, %v609, 0
        %614 = vmatprep.subr.bf16.mxu0 %v399
        %615 = vmatpush1.bf16.msra.mxu0 %v396
        %616 = vmatprep.subr.bf16.mxu0 0
        %617 = vmatpush1.bf16.msra.mxu0 0
        %618 = vmatprep.subr.bf16.mxu0 0
        %619 = vmatpush1.bf16.msra.mxu0 0
        %620 = vmatprep.subr.bf16.mxu0 0
        %621 = vmatpush1.bf16.msra.mxu0 0
        %622 = vmatprep.subr.bf16.mxu0 0
        %623 = vmatpush1.bf16.msra.mxu0 0
        %624 = vmatprep.subr.bf16.mxu0 0
        %625 = vmatpush1.bf16.msra.mxu0 0
        %626 = vmatprep.subr.bf16.mxu0 0
        %627 = vmatpush1.bf16.msra.mxu0 0
        %628 = vmatprep.subr.bf16.mxu0 0
        %629 = vmatpush1.bf16.msra.mxu0 0
        %630 = vmatprep.subr.bf16.mxu0 0
        %631 = vmatpush1.bf16.msra.mxu0 0
        %632 = vmatprep.subr.bf16.mxu0 0
        %633 = vmatpush1.bf16.msra.mxu0 0
        %634 = vmatprep.subr.bf16.mxu0 0
        %635 = vmatpush1.bf16.msra.mxu0 0
        %636 = vmatprep.subr.bf16.mxu0 0
        %637 = vmatpush1.bf16.msra.mxu0 0
        %638 = vmatprep.subr.bf16.mxu0 0
        %639 = vmatpush1.bf16.msra.mxu0 0
        %640 = vmatprep.subr.bf16.mxu0 0
        %641 = vmatpush1.bf16.msra.mxu0 0
        %642 = vmatprep.subr.bf16.mxu0 0
        %643 = vmatpush1.bf16.msra.mxu0 0
        %644 = vmatprep.subr.bf16.mxu0 0
        %645 = vmatpush1.bf16.msra.mxu0 0
        %646 = vmatprep.mubr.bf16.mxu0 0
        %647 = vmatmul.mubr.bf16.gmra.mrb[0].mxu0 %v612
        %v648 = vpop.f32.mrb[0].mxu0
        %v649 = vadd.f32 0.0, %v648
        %v650 = vpop.f32.mrb[0].mxu0
        %v651 = vadd.f32 0.0, %v650
        %v652 = vpop.f32.mrb[0].mxu0
        %v653 = vpop.f32.mrb[0].mxu0
        %654 = vdwg.mxu0
        %v656 = vsel %vm520, %v608, 0
        %658 = vmatprep.subr.bf16.mxu0 %v605
        %659 = vmatpush1.bf16.msra.mxu0 %v604
        %660 = vmatprep.subr.bf16.mxu0 %v607
        %661 = vmatpush1.bf16.msra.mxu0 %v606
        %662 = vmatprep.subr.bf16.mxu0 0
        %663 = vmatpush1.bf16.msra.mxu0 0
        %664 = vmatprep.subr.bf16.mxu0 0
        %665 = vmatpush1.bf16.msra.mxu0 0
        %666 = vmatprep.subr.bf16.mxu0 0
        %667 = vmatpush1.bf16.msra.mxu0 0
        %668 = vmatprep.subr.bf16.mxu0 0
        %669 = vmatpush1.bf16.msra.mxu0 0
        %670 = vmatprep.subr.bf16.mxu0 0
        %671 = vmatpush1.bf16.msra.mxu0 0
        %672 = vmatprep.subr.bf16.mxu0 0
        %673 = vmatpush1.bf16.msra.mxu0 0
        %674 = vmatprep.subr.bf16.mxu0 0
        %675 = vmatpush1.bf16.msra.mxu0 0
        %676 = vmatprep.subr.bf16.mxu0 0
        %677 = vmatpush1.bf16.msra.mxu0 0
        %678 = vmatprep.subr.bf16.mxu0 0
        %679 = vmatpush1.bf16.msra.mxu0 0
        %680 = vmatprep.subr.bf16.mxu0 0
        %681 = vmatpush1.bf16.msra.mxu0 0
        %682 = vmatprep.subr.bf16.mxu0 0
        %683 = vmatpush1.bf16.msra.mxu0 0
        %684 = vmatprep.subr.bf16.mxu0 0
        %685 = vmatpush1.bf16.msra.mxu0 0
        %686 = vmatprep.subr.bf16.mxu0 0
        %687 = vmatpush1.bf16.msra.mxu0 0
        %688 = vmatprep.subr.bf16.mxu0 0
        %689 = vmatpush1.bf16.msra.mxu0 0
        %690 = vmatprep.mubr.bf16.mxu0 0
        %691 = vmatmul.mubr.bf16.gmra.mrb[0].mxu0 %v656
        %v692 = vpop.f32.mrb[0].mxu0
        %v693 = vadd.f32 %v649, %v692
        %v694 = vpop.f32.mrb[0].mxu0
        %v695 = vadd.f32 %v651, %v694
        %v696 = vpop.f32.mrb[0].mxu0
        %v697 = vpop.f32.mrb[0].mxu0
        %698 = vdwg.mxu0
        %700 = vset.pattern.permute.xlu0 0
        %701 = vperm.xlu0 %700, %v610
        %v702 = vpop.permute.xlu0 %701
        %v704 = vadd.f32 %v693, %v702
        %v705 = vadd.f32 %v695, %v702
        %v706 = vxor.u32 %v704, 2147483648
        %v707 = vxor.u32 %v705, 2147483648
        %v708 = vmul.f32 %v706, 1.442695
        %v709 = vpow.pop %v708
        %v710 = vmul.f32 %v707, 1.442695
        %v711 = vpow.pop %v710
        %v712 = vadd.f32 %v709, 1.0
        %v713 = vadd.f32 %v711, 1.0
        %v714 = vrcp.pop %v712
        %v715 = vmul.f32 1.0, %v714
        %v716 = vrcp.pop %v713
        %v717 = vmul.f32 1.0, %v716
        %v718 = vpack.c.bf16 %v715, %v715
        %v719 = vpack.c.bf16 %v717, %v717
        %v722 = vcombine.low %v718, %v719
        %v724 = vunpack.c.l.s4 1983009808
        %v725 = vunpack.c.0.s8 %v724
        %v726 = vlaneseq
        %v727 = vshrl.u32 %v726, 7
        %v728 = vsub.s32 %v725, %v727
        %v729 = vrot.slane %v722, %v728
        %731 = vst [vmem:[%s323] sm:$0xf] %v729
        %s732 = sand.u32 %s219, 1
        %s733 = scalar_lea.sflag [#allocation3], %s732
        %s734 = sand.u32 %s219, 1
        %s735 = smul.addr %s734, 4
        %s736 = scalar_lea.vmem [#allocation2], %s735
        // Predicated region
        $region53: #{tpu_custom_call.1} parent=51 // pred_check
          %p737 = pneg %p229
        $region54: #{tpu_custom_call.1} parent=51 // pred_check_branch
          %739 = sbr.rel (%p737) target = $region56
        $region55: #{tpu_custom_call.1} parent=51 // pred_region
          %s740 = smul.u32 2, %s27
          %s742 = ssub.s32 64, 64
          %743 = vsyncadd %s733, %s742
          %s744 = smul.addr %s26, 2
          %s745 = sadd.s32 %s740, %s744
          %s746 = smul.addr %s745, 32
          %s747 = scalar_lea.hbm %s8, %s746
          %s749 = sshll.u32 %s736, 4
          %s750 = int_to_ptr.vmem [resolvable:$true] %s749
          %752 = dma.vmem_to_hbm [thread:$0]  %s750, 64, %s747, %s733
        $region56: #{tpu_custom_call.1} parent=51 // pred_fallthru
          _
      $region52: #{tpu_custom_call.1} parent=5 // pred_fallthru
        _
      %p753 = scmp.le.s32.totalorder 2, %s17
      // Predicated region
      $region57: #{tpu_custom_call.1} parent=5 // pred_check
        %p754 = pneg %p753
      $region58: #{tpu_custom_call.1} parent=5 // pred_check_branch
        %756 = sbr.rel (%p754) target = $region60
      $region59: #{tpu_custom_call.1} parent=5 // pred_region
        %s757 = ssub.s32 %s17, 2
        // Predicated region
        $region61: #{tpu_custom_call.1} parent=59 // pred_check
          %p758 = pneg %p235
        $region62: #{tpu_custom_call.1} parent=59 // pred_check_branch
          %760 = sbr.rel (%p758) target = $region64
        $region63: #{tpu_custom_call.1} parent=59 // pred_region
          %s761 = sand.u32 %s220, 1
          %s762 = scalar_lea.sflag [#allocation3], %s761
          %s763 = sand.u32 %s220, 1
          %s764 = smul.addr %s763, 4
          %s765 = scalar_lea.vmem [#allocation2], %s764
          %766 = dma.done %s762, 64
        $region64: #{tpu_custom_call.1} parent=59 // pred_fallthru
          _
      $region60: #{tpu_custom_call.1} parent=5 // pred_fallthru
        _
    $region6: #{tpu_custom_call.1} parent=1 // loop_footer
      %s21 = sadd.s32 1, %s17
    $region7: #{tpu_custom_call.1} parent=1 // loop_footer_branch
      %16 = sbr.rel target = $region3
    $region8: #{tpu_custom_call.1} parent=1 // loop_exit
      _
    %767 = vsyncpa [#allocation3], 1
    %s768 = scalar_lea.sflag [#allocation3], 1
    %769 = vsyncpa %s768, 1

</llo_original>
